<compile_context>
chip_gen: v6e
topology: v6e:2x2x1
jax: 0.10.0
libtpu: 0.0.40
codegen_flags: <defaults>
</compile_context>

<pallas_src>
import functools

import jax
import jax.numpy as jnp
from jax.experimental import pallas as pl
from jax.experimental.pallas import tpu as pltpu


def _round_up(x, m):
    return ((x + m - 1) // m) * m


def _largest_tile(total, cap, granule):
    """Largest multiple of `granule` that divides `total` and is <= cap.

    `total` must itself be a multiple of `granule`.
    """
    best = granule
    t = granule
    while t <= min(total, cap):
        if total % t == 0:
            best = t
        t += granule
    return best


def _matmul_bias_kernel(lhs_ref, rhs_ref, b_ref, o_ref):
    """o = lhs @ rhs + b, whole K reduction in a single MXU pass.

    lhs_ref: (tm, K_pad) bf16 im2col patches tile
    rhs_ref: (K_pad, tn) bf16 weight tile (resident across the M axis)
    b_ref  : (1,  tn)    f32  bias tile
    o_ref  : (tm, tn)    out tile (input dtype)
    """
    o_ref[...] = (
        jnp.dot(lhs_ref[...], rhs_ref[...], preferred_element_type=jnp.float32)
        + b_ref[...]
    ).astype(o_ref.dtype)


def _matmul_bias_ksplit_kernel(lhs_ref, rhs_ref, b_ref, o_ref, acc_ref):
    """Fallback for very large K: K-split reduction with f32 VMEM accumulator."""
    @pl.when(pl.program_id(2) == 0)
    def _():
        acc_ref[...] = jnp.zeros_like(acc_ref)

    acc_ref[...] += jnp.dot(lhs_ref[...], rhs_ref[...],
                            preferred_element_type=jnp.float32)

    @pl.when(pl.program_id(2) == pl.num_programs(2) - 1)
    def _():
        o_ref[...] = (acc_ref[...] + b_ref[...]).astype(o_ref.dtype)


def conv_layer_forward(x_nchw, weight, bias, *, kernel_size, stride):
    """Forward of ConvLayer (ReflectionPad2d(k//2) + Conv2d(k, stride)).

    x_nchw : (N, Cin, H, W)
    weight : (Cout, Cin, k, k)   (PyTorch conv weight layout)
    bias   : (Cout,)
    returns: (N, Cout, Ho, Wo)
    """
    k = kernel_size
    pad = k // 2
    N, Cin, H, W = x_nchw.shape
    Cout = weight.shape[0]

    # ---- glue: layout, reflection pad, im2col (pure data movement) ----------
    x_nhwc = jnp.transpose(x_nchw, (0, 2, 3, 1))                    # NCHW -> NHWC
    x_pad = jnp.pad(x_nhwc, ((0, 0), (pad, pad), (pad, pad), (0, 0)),
                    mode="reflect")                                 # ReflectionPad2d
    Hp, Wp = H + 2 * pad, W + 2 * pad
    Ho = (Hp - k) // stride + 1
    Wo = (Wp - k) // stride + 1

    # im2col: patches[n, ho, wo, (di*k + dj)*Cin + c] = x_pad[n, ho*s+di, wo*s+dj, c]
    taps = []
    for di in range(k):
        for dj in range(k):
            taps.append(x_pad[:, di:di + (Ho - 1) * stride + 1:stride,
                              dj:dj + (Wo - 1) * stride + 1:stride, :])
    patches = jnp.concatenate(taps, axis=-1)                        # (N, Ho, Wo, k*k*Cin)

    M = N * Ho * Wo
    Kdim = k * k * Cin
    lhs = patches.reshape(M, Kdim)

    # weight (Cout, Cin, k, k) -> (k, k, Cin, Cout) -> (k*k*Cin, Cout); matches
    # the (di, dj, c) flattening order of the patches above.
    rhs = jnp.transpose(weight, (2, 3, 1, 0)).reshape(Kdim, Cout)

    # ---- padding: 128-granular only, decoupled from tile sizes --------------
    K_pad = _round_up(Kdim, 128)
    N_pad = _round_up(Cout, 128)

    # tn: cover all of Cout in one tile when possible (<=512 lanes) so the big
    # im2col lhs is streamed from HBM exactly once and rhs stays VMEM-resident.
    tn = _largest_tile(N_pad, 512, 128)

    # tm: large tile (amortize per-step overhead), multiple of 16 (bf16 sublane
    # tile), but keep >= 2 M tiles so v7x's two TensorCores both get work.
    M16 = _round_up(M, 16)
    tm = min(512, M16)
    if tm >= M16 and M16 > 16:
        tm = _round_up((M16 + 1) // 2, 16)
    M_pad = _round_up(M, tm)

    # tk: full reduction dim in one tile (typical conv K = k*k*Cin is small),
    # removing the K grid axis and the per-step accumulator round trip.  Only
    # K-split if the full-K tiles would blow the VMEM budget.
    bytes_full_k = (2 * (2 * tm * K_pad)          # lhs, double buffered, bf16
                    + 2 * (2 * K_pad * tn)        # rhs, double buffered, bf16
                    + 2 * (4 * tm * tn))          # out, double buffered, f32
    use_ksplit = bytes_full_k > 28 * 1024 * 1024
    tk = K_pad if not use_ksplit else _largest_tile(K_pad, 2048, 128)

    lhs_p = jnp.pad(lhs, ((0, M_pad - M), (0, K_pad - Kdim))).astype(jnp.bfloat16)
    rhs_p = jnp.pad(rhs, ((0, K_pad - Kdim), (0, N_pad - Cout))).astype(jnp.bfloat16)
    b_p = jnp.pad(bias.reshape(1, Cout).astype(jnp.float32),
                  ((0, 0), (0, N_pad - Cout)))

    compiler_vmem = 40 * 1024 * 1024   # fits v7x 64 MiB/TC with headroom

    if not use_ksplit:
        grid = (M_pad // tm, N_pad // tn)
        out_flat = pl.pallas_call(
            _matmul_bias_kernel,
            out_shape=jax.ShapeDtypeStruct((M_pad, N_pad), x_nchw.dtype),
            grid_spec=pltpu.PrefetchScalarGridSpec(
                num_scalar_prefetch=0,
                grid=grid,
                in_specs=[
                    pl.BlockSpec((tm, tk), lambda i, j: (i, 0)),
                    pl.BlockSpec((tk, tn), lambda i, j: (0, j)),
                    pl.BlockSpec((1, tn), lambda i, j: (0, j)),
                ],
                out_specs=pl.BlockSpec((tm, tn), lambda i, j: (i, j)),
            ),
            compiler_params=pltpu.CompilerParams(
                dimension_semantics=("parallel", "parallel"),
                vmem_limit_bytes=compiler_vmem,
            ),
        )(lhs_p, rhs_p, b_p)
    else:
        grid = (M_pad // tm, N_pad // tn, K_pad // tk)
        out_flat = pl.pallas_call(
            _matmul_bias_ksplit_kernel,
            out_shape=jax.ShapeDtypeStruct((M_pad, N_pad), x_nchw.dtype),
            grid_spec=pltpu.PrefetchScalarGridSpec(
                num_scalar_prefetch=0,
                grid=grid,
                in_specs=[
                    pl.BlockSpec((tm, tk), lambda i, j, kk: (i, kk)),
                    pl.BlockSpec((tk, tn), lambda i, j, kk: (kk, j)),
                    pl.BlockSpec((1, tn), lambda i, j, kk: (0, j)),
                ],
                out_specs=pl.BlockSpec((tm, tn), lambda i, j, kk: (i, j)),
                scratch_shapes=[pltpu.VMEM((tm, tn), jnp.float32)],
            ),
            compiler_params=pltpu.CompilerParams(
                dimension_semantics=("parallel", "parallel", "arbitrary"),
                vmem_limit_bytes=compiler_vmem,
            ),
        )(lhs_p, rhs_p, b_p)

    out = out_flat[:M, :Cout].reshape(N, Ho, Wo, Cout)
    return jnp.transpose(out, (0, 3, 1, 2))                         # NHWC -> NCHW


def _reference_forward(x_nchw, weight, bias, *, kernel_size, stride):
    """Pure-JAX reference (lax conv) for correctness checking."""
    pad = kernel_size // 2
    x_pad = jnp.pad(x_nchw, ((0, 0), (0, 0), (pad, pad), (pad, pad)),
                    mode="reflect")
    out = jax.lax.conv_general_dilated(
        x_pad.astype(jnp.float32), weight.astype(jnp.float32),
        window_strides=(stride, stride), padding="VALID",
        dimension_numbers=("NCHW", "OIHW", "NCHW"),
        precision=jax.lax.Precision.HIGHEST)
    return out + bias.reshape(1, -1, 1, 1)


if __name__ == "__main__":
    # Small, forward-consistent shapes.
    N, Cin, H, W = 2, 4, 16, 16
    Cout, kernel_size, stride = 8, 3, 2

    key = jax.random.PRNGKey(0)
    kx, kw, kb = jax.random.split(key, 3)

    x = jax.random.normal(kx, (N, Cin, H, W), dtype=jnp.float32)

    # Deterministic init mimicking PyTorch Conv2d default (uniform +-1/sqrt(fan_in)).
    fan_in = Cin * kernel_size * kernel_size
    bound = 1.0 / (fan_in ** 0.5)
    weight = jax.random.uniform(kw, (Cout, Cin, kernel_size, kernel_size),
                                minval=-bound, maxval=bound, dtype=jnp.float32)
    bias = jax.random.uniform(kb, (Cout,), minval=-bound, maxval=bound,
                              dtype=jnp.float32)

    fwd = functools.partial(conv_layer_forward,
                            kernel_size=kernel_size, stride=stride)
    out = jax.block_until_ready(fwd(x, weight, bias))

    # 1) Tight check of the kernel math against a reference fed the same
    #    bf16-rounded operands (the kernel casts to bf16 for the MXU).
    ref_bf16_inputs = _reference_forward(
        x.astype(jnp.bfloat16).astype(jnp.float32),
        weight.astype(jnp.bfloat16).astype(jnp.float32),
        bias, kernel_size=kernel_size, stride=stride)
    assert out.shape == ref_bf16_inputs.shape, (out.shape, ref_bf16_inputs.shape)
    assert jnp.allclose(out, ref_bf16_inputs, atol=1e-3, rtol=1e-3), \
        "mismatch vs bf16-input reference"

    # 2) Loose check against the full-f32 module semantics (bf16 MXU operands
    #    introduce ~1e-3-level relative rounding).
    ref = _reference_forward(x, weight, bias,
                             kernel_size=kernel_size, stride=stride)
    assert jnp.allclose(out, ref, atol=5e-2, rtol=5e-2), "mismatch vs f32 reference"

    print("KERNEL_OK")
</pallas_src>

<mosaic_0001>
module attributes {stable_mosaic.version = 11 : i64} {
  func.func @_matmul_bias_kernel(%arg0: i32, %arg1: i32, %arg2: memref<64x128xbf16, #tpu.memory_space<vmem>>, %arg3: memref<128x128xbf16, #tpu.memory_space<vmem>>, %arg4: memref<1x128xf32, #tpu.memory_space<vmem>>, %arg5: memref<64x128xf32, #tpu.memory_space<vmem>>) attributes {dimension_semantics = [#tpu.dimension_semantics<parallel>, #tpu.dimension_semantics<parallel>], iteration_bounds = array<i64: 2, 1>, scalar_prefetch = 0 : i64, scratch_operands = 0 : i64, tpu.core_type = #tpu.core_type<tc>, window_params = [{transform_indices = @transform_0, window_bounds = array<i64: 64, 128>}, {transform_indices = @transform_1, window_bounds = array<i64: 128, 128>}, {transform_indices = @transform_2, window_bounds = array<i64: 1, 128>}, {transform_indices = @transform_3, window_bounds = array<i64: 64, 128>}]} {
    %c0 = arith.constant 0 : index
    %c0_0 = arith.constant 0 : index
    %0 = vector.load %arg2[%c0, %c0_0] : memref<64x128xbf16, #tpu.memory_space<vmem>>, vector<64x128xbf16>
    %c0_1 = arith.constant 0 : index
    %c0_2 = arith.constant 0 : index
    %1 = vector.load %arg3[%c0_1, %c0_2] : memref<128x128xbf16, #tpu.memory_space<vmem>>, vector<128x128xbf16>
    %cst = arith.constant dense<0.000000e+00> : vector<64x128xf32>
    %2 = tpu.matmul %0, %1, %cst {dimension_numbers = #tpu.dot_dimension_numbers<[1], [0], [0], [1], [0, 0, 1, 1], [], []>} : vector<64x128xbf16>, vector<128x128xbf16>, vector<64x128xf32> -> vector<64x128xf32>
    %c0_3 = arith.constant 0 : index
    %c0_4 = arith.constant 0 : index
    %3 = vector.load %arg4[%c0_3, %c0_4] : memref<1x128xf32, #tpu.memory_space<vmem>>, vector<1x128xf32>
    %4 = vector.broadcast %3 : vector<1x128xf32> to vector<64x128xf32>
    %5 = arith.addf %2, %4 : vector<64x128xf32>
    %c0_5 = arith.constant 0 : index
    %c0_6 = arith.constant 0 : index
    %6 = vector.load %arg5[%c0_5, %c0_6] : memref<64x128xf32, #tpu.memory_space<vmem>>, vector<64x128xf32>
    tpu.vector_store %arg5[%c0_5, %c0_6], %5 {strides = array<i32>} : memref<64x128xf32, #tpu.memory_space<vmem>>, vector<64x128xf32>,
    return
  }
  func.func @transform_0(%arg0: i32, %arg1: i32) -> (i32, i32) {
    %c0_i32 = arith.constant 0 : i32
    %c0_i32_0 = arith.constant 0 : i32
    return %arg0, %c0_i32 : i32, i32
  }
  func.func @transform_1(%arg0: i32, %arg1: i32) -> (i32, i32) {
    %c0_i32 = arith.constant 0 : i32
    %c0_i32_0 = arith.constant 0 : i32
    return %c0_i32, %arg1 : i32, i32
  }
  func.func @transform_2(%arg0: i32, %arg1: i32) -> (i32, i32) {
    %c0_i32 = arith.constant 0 : i32
    %c0_i32_0 = arith.constant 0 : i32
    return %c0_i32, %arg1 : i32, i32
  }
  func.func @transform_3(%arg0: i32, %arg1: i32) -> (i32, i32) {
    %c0_i32 = arith.constant 0 : i32
    return %arg0, %arg1 : i32, i32
  }
}

</mosaic_0001>

<llo_original>
// kernel: tpu_custom_call.1
$region0: #{tpu_custom_call.1}
  #allocation0 [shape = 'u32[]', space=smem, size = 0x4, offset = 0x4, fixed_abs, tag = 'smem constant byte address 0x4 - core index']
  #allocation1 [shape = 'u32[144,128]{1,0:T(1,128)}', space=vmem, size = 0x12000, scoped, tag = 'internal scratch']
  %s0 = inlined_call_operand.hbm [shape: bf16[128,128], index: 0, kind: input, shape index: {}]
  %s1 = inlined_call_operand.hbm [shape: bf16[128,128], index: 1, kind: input, shape index: {}]
  %s2 = inlined_call_operand.vmem [shape: f32[1,128], index: 2, kind: input, shape index: {}]
  %s3 = inlined_call_operand.hbm [shape: f32[128,128], index: 3, kind: output, shape index: {}]
  %s4 = sld [smem:[#allocation0]]
  $region53: #{tpu_custom_call.1} parent=0
    _
  %s6 = ssub.s32 1, %s4
  %s7 = scalar_select 0, %s6, %s4
  $region1: #{tpu_custom_call.1} parent=0
    #allocation2 [shape = 'u8[32768]{0}', space=vmem, size = 0x8000, scoped, tag = 'input window, operand 0']
    #allocation3 [shape = 's32[2]{0}', space=sflag, size = 0x8, scoped, tag = 'scoped memory for tpu_custom_call.1']
    #allocation4 [shape = 's32[2]{0}', space=sflag, size = 0x8, scoped, tag = 'scoped memory for tpu_custom_call.1']
    #allocation5 [shape = 'u8[32768]{0}', space=vmem, size = 0x8000, scoped, tag = 'input window, operand 1, single buffered']
    #allocation6 [shape = 's32[1]{0}', space=sflag, size = 0x4, scoped, tag = 'scoped memory for tpu_custom_call.1']
    #allocation7 [shape = 'u8[65536]{0}', space=vmem, size = 0x10000, scoped, tag = 'output window, operand 0']
    %8 = vsyncpa [#allocation3], 0
    %s9 = scalar_lea.sflag [#allocation3], 1
    %10 = vsyncpa %s9, 0
    %11 = vsyncpa [#allocation6], 0
    %12 = vsyncpa [#allocation4], 0
    %s13 = scalar_lea.sflag [#allocation4], 1
    %14 = vsyncpa %s13, 0
    loop: start=0, step=1, limit=4
    $region2: #{tpu_custom_call.1} parent=1 // loop_pre_header
      _
    $region3: #{tpu_custom_call.1} parent=1 // loop_header
      %s16 = sphi 0, %s20
      %p17 = scmp.ge.s32.totalorder %s16, 4
      %s23 = sphi 0, %s35
      %s24 = sphi 0, %s31
      %s25 = sphi 0, %s23
      %s26 = sphi 0, %s24
      %s27 = sphi 0, %s25
      %s28 = sphi 0, %s26
      %s38 = sphi 0, %s40
      %s41 = sphi 0, %s38
      %s42 = sphi 0, %s41
      %s58 = sphi 0, %s42
      %s64 = sphi 0, %s66
      %s67 = sphi 0, %s64
      %s68 = sphi 0, %s67
      %s84 = sphi 0, %s68
      %s90 = sphi 0, %s92
      %s93 = sphi 0, %s90
      %s94 = sphi 0, %s93
      %s110 = sphi 0, %s94
      %s118 = sphi 0, %s120
      %s121 = sphi 0, %s118
      %s122 = sphi 0, %s121
      %s138 = sphi 0, %s122
    $region4: #{tpu_custom_call.1} parent=1 // loop_header_branch
      %19 = sbr.rel (%p17) target = $region8
    $region5: #{tpu_custom_call.1} parent=1 // loop_body
      %s21 = ssub.s32 %s16, 1
      %s22 = ssub.s32 %s16, 2
      %s29 = sadd.s32 1, %s24
      %p30 = scmp.ge.s32.totalorder %s29, 1
      %s31 = scalar_select %p30, 0, %s29
      %s32 = sadd.s32 1, %s23
      %s33 = scalar_select %p30, %s32, %s23
      %p34 = scmp.ge.s32.totalorder %s33, 2
      %s35 = scalar_select %p34, 0, %s33
      %s36 = ssub.s32 %s23, %s35
      %p37 = scmp.eq.s32.totalorder %s36, 0
      %s39 = sadd.s32 %s38, 1
      %s40 = scalar_select %p37, %s38, %s39
      %p43 = pneg %p37
      %p44 = scmp.eq.s32.totalorder %s16, 1
      %p45 = por %p43, %p44
      %p46 = scmp.ne.s32.totalorder %s38, %s41
      %p47 = scmp.eq.s32.totalorder %s16, 0
      %p48 = por %p46, %p47
      %p49 = scmp.ne.s32.totalorder %s38, %s41
      %p50 = scmp.eq.s32.totalorder %s21, 1
      %p51 = por %p49, %p50
      %p52 = scmp.ne.s32.totalorder %s41, %s42
      %p53 = scmp.eq.s32.totalorder %s21, 0
      %p54 = por %p52, %p53
      %p55 = scmp.ne.s32.totalorder %s41, %s42
      %p56 = scmp.eq.s32.totalorder %s22, 1
      %p57 = por %p55, %p56
      %p59 = scmp.ne.s32.totalorder %s42, %s58
      %p60 = scmp.eq.s32.totalorder %s22, 0
      %p61 = por %p59, %p60
      %s62 = ssub.s32 %s24, %s31
      %p63 = scmp.eq.s32.totalorder %s62, 0
      %s65 = sadd.s32 %s64, 1
      %s66 = scalar_select %p63, %s64, %s65
      %p69 = pneg %p63
      %p70 = scmp.eq.s32.totalorder %s16, 1
      %p71 = por %p69, %p70
      %p72 = scmp.ne.s32.totalorder %s64, %s67
      %p73 = scmp.eq.s32.totalorder %s16, 0
      %p74 = por %p72, %p73
      %p75 = scmp.ne.s32.totalorder %s64, %s67
      %p76 = scmp.eq.s32.totalorder %s21, 1
      %p77 = por %p75, %p76
      %p78 = scmp.ne.s32.totalorder %s67, %s68
      %p79 = scmp.eq.s32.totalorder %s21, 0
      %p80 = por %p78, %p79
      %p81 = scmp.ne.s32.totalorder %s67, %s68
      %p82 = scmp.eq.s32.totalorder %s22, 1
      %p83 = por %p81, %p82
      %p85 = scmp.ne.s32.totalorder %s68, %s84
      %p86 = scmp.eq.s32.totalorder %s22, 0
      %p87 = por %p85, %p86
      %s88 = ssub.s32 %s24, %s31
      %p89 = scmp.eq.s32.totalorder %s88, 0
      %s91 = sadd.s32 %s90, 1
      %s92 = scalar_select %p89, %s90, %s91
      %p95 = pneg %p89
      %p96 = scmp.eq.s32.totalorder %s16, 1
      %p97 = por %p95, %p96
      %p98 = scmp.ne.s32.totalorder %s90, %s93
      %p99 = scmp.eq.s32.totalorder %s16, 0
      %p100 = por %p98, %p99
      %p101 = scmp.ne.s32.totalorder %s90, %s93
      %p102 = scmp.eq.s32.totalorder %s21, 1
      %p103 = por %p101, %p102
      %p104 = scmp.ne.s32.totalorder %s93, %s94
      %p105 = scmp.eq.s32.totalorder %s21, 0
      %p106 = por %p104, %p105
      %p107 = scmp.ne.s32.totalorder %s93, %s94
      %p108 = scmp.eq.s32.totalorder %s22, 1
      %p109 = por %p107, %p108
      %p111 = scmp.ne.s32.totalorder %s94, %s110
      %p112 = scmp.eq.s32.totalorder %s22, 0
      %p113 = por %p111, %p112
      %s114 = ssub.s32 %s23, %s35
      %s115 = ssub.s32 %s24, %s31
      %s116 = sor.u32 %s114, %s115
      %p117 = scmp.eq.s32.totalorder %s116, 0
      %s119 = sadd.s32 %s118, 1
      %s120 = scalar_select %p117, %s118, %s119
      %p123 = pneg %p117
      %p124 = scmp.eq.s32.totalorder %s16, 1
      %p125 = por %p123, %p124
      %p126 = scmp.ne.s32.totalorder %s118, %s121
      %p127 = scmp.eq.s32.totalorder %s16, 0
      %p128 = por %p126, %p127
      %p129 = scmp.ne.s32.totalorder %s118, %s121
      %p130 = scmp.eq.s32.totalorder %s21, 1
      %p131 = por %p129, %p130
      %p132 = scmp.ne.s32.totalorder %s121, %s122
      %p133 = scmp.eq.s32.totalorder %s21, 0
      %p134 = por %p132, %p133
      %p135 = scmp.ne.s32.totalorder %s121, %s122
      %p136 = scmp.eq.s32.totalorder %s22, 1
      %p137 = por %p135, %p136
      %p139 = scmp.ne.s32.totalorder %s122, %s138
      %p140 = scmp.eq.s32.totalorder %s22, 0
      %p141 = por %p139, %p140
      %p142 = scmp.le.s32.totalorder 1, %s16
      %p143 = scmp.lt.s32.totalorder %s16, 3
      %p144 = pnand %p142, %p143
      %p145 = pneg %p144
      // Predicated region
      $region9: #{tpu_custom_call.1} parent=5 // pred_check
        _
      $region10: #{tpu_custom_call.1} parent=5 // pred_check_branch
        %147 = sbr.rel (%p144) target = $region12
      $region11: #{tpu_custom_call.1} parent=5 // pred_region
        %s148 = ssub.s32 %s16, 1
        // Predicated region
        $region13: #{tpu_custom_call.1} parent=11 // pred_check
          %p149 = pneg %p80
        $region14: #{tpu_custom_call.1} parent=11 // pred_check_branch
          %151 = sbr.rel (%p149) target = $region16
        $region15: #{tpu_custom_call.1} parent=11 // pred_region
          %s153 = ssub.s32 1024, 1024
          %154 = vsyncadd [#allocation6], %s153
          %s155 = smul.addr %s26, 64
          %s156 = scalar_lea.hbm %s1, %s155
          %s157 = sshll.u32 [#allocation5], 4
          %s158 = int_to_ptr.vmem [resolvable:$true] %s157
          %163 = dma.hbm_to_vmem [thread:$0]  %s156, 1024, %s158, [#allocation6], 64, 64, 4
        $region16: #{tpu_custom_call.1} parent=11 // pred_fallthru
          _
        // Predicated region
        $region17: #{tpu_custom_call.1} parent=11 // pred_check
          %p164 = pneg %p106
        $region18: #{tpu_custom_call.1} parent=11 // pred_check_branch
          %166 = sbr.rel (%p164) target = $region20
        $region19: #{tpu_custom_call.1} parent=11 // pred_region
          %p167 = scmp.lt.s32.totalorder %s26, 0
          %s168 = scalar_select %p167, %s26, 0
          %s169 = scalar_lea.vmem %s2, %s168
        $region20: #{tpu_custom_call.1} parent=11 // pred_fallthru
          _
      $region12: #{tpu_custom_call.1} parent=5 // pred_fallthru
        _
      %p170 = scmp.lt.s32.totalorder %s16, 2
      // Predicated region
      $region21: #{tpu_custom_call.1} parent=5 // pred_check
        %p171 = pneg %p170
      $region22: #{tpu_custom_call.1} parent=5 // pred_check_branch
        %173 = sbr.rel (%p171) target = $region24
      $region23: #{tpu_custom_call.1} parent=5 // pred_region
        // Predicated region
        $region25: #{tpu_custom_call.1} parent=23 // pred_check
          %p174 = pneg %p48
        $region26: #{tpu_custom_call.1} parent=23 // pred_check_branch
          %176 = sbr.rel (%p174) target = $region28
        $region27: #{tpu_custom_call.1} parent=23 // pred_region
          %s177 = sand.u32 %s38, 1
          %s178 = scalar_lea.sflag [#allocation3], %s177
          %s179 = sand.u32 %s38, 1
          %s180 = smul.addr %s179, 32
          %s181 = scalar_lea.vmem [#allocation2], %s180
          %s182 = smul.u32 8, %s23
          %s184 = ssub.s32 512, 512
          %185 = vsyncadd %s178, %s184
          %s186 = smul.addr %s182, 64
          %s187 = scalar_lea.hbm %s0, %s186
          %s188 = sshll.u32 %s181, 4
          %s189 = int_to_ptr.vmem [resolvable:$true] %s188
          %194 = dma.hbm_to_vmem [thread:$0]  %s187, 512, %s189, %s178, 64, 64, 4
        $region28: #{tpu_custom_call.1} parent=23 // pred_fallthru
          _
      $region24: #{tpu_custom_call.1} parent=5 // pred_fallthru
        _
      %p195 = scmp.le.s32.totalorder 1, %s16
      %p196 = scmp.lt.s32.totalorder %s16, 3
      %p197 = pnand %p195, %p196
      %p198 = pneg %p197
      // Predicated region
      $region29: #{tpu_custom_call.1} parent=5 // pred_check
        _
      $region30: #{tpu_custom_call.1} parent=5 // pred_check_branch
        %200 = sbr.rel (%p197) target = $region32
      $region31: #{tpu_custom_call.1} parent=5 // pred_region
        %s201 = ssub.s32 %s16, 1
        %s202 = sand.u32 %s41, 1
        %s203 = scalar_lea.sflag [#allocation3], %s202
        %s204 = sand.u32 %s41, 1
        %s205 = smul.addr %s204, 32
        %s206 = scalar_lea.vmem [#allocation2], %s205
        // Predicated region
        $region33: #{tpu_custom_call.1} parent=31 // pred_check
          %p207 = pneg %p54
        $region34: #{tpu_custom_call.1} parent=31 // pred_check_branch
          %209 = sbr.rel (%p207) target = $region36
        $region35: #{tpu_custom_call.1} parent=31 // pred_region
          %210 = dma.done %s203, 512
        $region36: #{tpu_custom_call.1} parent=31 // pred_fallthru
          _
        // Predicated region
        $region37: #{tpu_custom_call.1} parent=31 // pred_check
          %p211 = pneg %p80
        $region38: #{tpu_custom_call.1} parent=31 // pred_check_branch
          %213 = sbr.rel (%p211) target = $region40
        $region39: #{tpu_custom_call.1} parent=31 // pred_region
          %214 = dma.done [#allocation6], 1024
        $region40: #{tpu_custom_call.1} parent=31 // pred_fallthru
          _
        %s215 = sand.u32 %s41, 1
        %s216 = scalar_lea.sflag [#allocation3], %s215
        %s217 = sand.u32 %s41, 1
        %s218 = smul.addr %s217, 32
        %s219 = scalar_lea.vmem [#allocation2], %s218
        %p220 = pneg %p54
        %p221 = pneg %p51
        %p222 = pneg %p80
        %p223 = pneg %p77
        %p224 = scmp.lt.s32.totalorder %s26, 0
        %s225 = scalar_select %p224, %s26, 0
        %s226 = scalar_lea.vmem %s2, %s225
        %p227 = pneg %p106
        %p228 = pneg %p103
        %p229 = pneg %p134
        %p230 = pneg %p131
        %s231 = sand.u32 %s121, 1
        %s232 = scalar_lea.sflag [#allocation4], %s231
        %s233 = sand.u32 %s121, 1
        %s234 = smul.addr %s233, 64
        %s235 = scalar_lea.vmem [#allocation7], %s234
        %s236 = smul.u32 8, %s25
        %p237 = scmp.lt.s32.totalorder %s26, 0
        %s238 = scalar_select %p237, %s26, 0
        %s239 = scalar_lea.vmem %s2, %s238
        %s240 = smul.u32 8, %s25
        %v242 = vld [vmem:[%s206] sm:$0xf]
        %v243 = vld [vmem:[%s206 + $0x4] sm:$0xf]
        %v244 = vld [vmem:[%s206 + $0x8] sm:$0xf]
        %v245 = vld [vmem:[%s206 + $0xc] sm:$0xf]
        %v246 = vld [vmem:[%s206 + $0x10] sm:$0xf]
        %v247 = vld [vmem:[%s206 + $0x14] sm:$0xf]
        %v248 = vld [vmem:[%s206 + $0x18] sm:$0xf]
        %v249 = vld [vmem:[%s206 + $0x1c] sm:$0xf]
        %v250 = vld [vmem:[#allocation5] sm:$0xf]
        %v251 = vld [vmem:[#allocation5 + $0x4] sm:$0xf]
        %v252 = vld [vmem:[#allocation5 + $0x8] sm:$0xf]
        %v253 = vld [vmem:[#allocation5 + $0xc] sm:$0xf]
        %v254 = vld [vmem:[#allocation5 + $0x10] sm:$0xf]
        %v255 = vld [vmem:[#allocation5 + $0x14] sm:$0xf]
        %v256 = vld [vmem:[#allocation5 + $0x18] sm:$0xf]
        %v257 = vld [vmem:[#allocation5 + $0x1c] sm:$0xf]
        %v258 = vld [vmem:[#allocation5 + $0x20] sm:$0xf]
        %v259 = vld [vmem:[#allocation5 + $0x24] sm:$0xf]
        %v260 = vld [vmem:[#allocation5 + $0x28] sm:$0xf]
        %v261 = vld [vmem:[#allocation5 + $0x2c] sm:$0xf]
        %v262 = vld [vmem:[#allocation5 + $0x30] sm:$0xf]
        %v263 = vld [vmem:[#allocation5 + $0x34] sm:$0xf]
        %v264 = vld [vmem:[#allocation5 + $0x38] sm:$0xf]
        %v265 = vld [vmem:[#allocation5 + $0x3c] sm:$0xf]
        %v266 = vld [vmem:[%s239] sm:$0x1]
        %v268 = vlaneseq
        %v269 = vshrl.u32 %v268, 7
        %v270 = vsub.s32 0, %v269
        %v271 = vrot.slane %v266, %v270
        %v281 = vunpack.c.l.b16 %v242
        %v282 = vunpack.c.l.b16 %v243
        %v283 = vunpack.c.l.b16 %v244
        %v284 = vunpack.c.l.b16 %v245
        %v285 = vunpack.c.l.b16 %v246
        %v286 = vunpack.c.l.b16 %v247
        %v287 = vunpack.c.l.b16 %v248
        %v288 = vunpack.c.l.b16 %v249
        %v289 = vpack.c.b16 %v282, %v281
        %v290 = vpack.c.b16 %v284, %v283
        %v291 = vpack.c.b16 %v286, %v285
        %v292 = vpack.c.b16 %v288, %v287
        %v313 = vunpack.c.l.b16 %v250
        %v314 = vunpack.c.l.b16 %v251
        %v315 = vunpack.c.l.b16 %v252
        %v316 = vunpack.c.l.b16 %v253
        %v317 = vunpack.c.l.b16 %v254
        %v318 = vunpack.c.l.b16 %v255
        %v319 = vunpack.c.l.b16 %v256
        %v320 = vunpack.c.l.b16 %v257
        %v321 = vunpack.c.l.b16 %v258
        %v322 = vunpack.c.l.b16 %v259
        %v323 = vunpack.c.l.b16 %v260
        %v324 = vunpack.c.l.b16 %v261
        %v325 = vunpack.c.l.b16 %v262
        %v326 = vunpack.c.l.b16 %v263
        %v327 = vunpack.c.l.b16 %v264
        %v328 = vunpack.c.l.b16 %v265
        %v329 = vpack.c.b16 %v314, %v313
        %v330 = vpack.c.b16 %v316, %v315
        %v331 = vpack.c.b16 %v318, %v317
        %v332 = vpack.c.b16 %v320, %v319
        %v333 = vpack.c.b16 %v322, %v321
        %v334 = vpack.c.b16 %v324, %v323
        %v335 = vpack.c.b16 %v326, %v325
        %v336 = vpack.c.b16 %v328, %v327
        %345 = vmatprep.subr.bf16.mxu0 0
        %346 = vmatpush1.bf16.msra.mxu0 %v336
        %347 = vmatprep.subr.bf16.mxu0 0
        %348 = vmatpush1.bf16.msra.mxu0 %v335
        %349 = vmatprep.subr.bf16.mxu0 0
        %350 = vmatpush1.bf16.msra.mxu0 %v334
        %351 = vmatprep.subr.bf16.mxu0 0
        %352 = vmatpush1.bf16.msra.mxu0 %v333
        %353 = vmatprep.subr.bf16.mxu0 0
        %354 = vmatpush1.bf16.msra.mxu0 %v332
        %355 = vmatprep.subr.bf16.mxu0 0
        %356 = vmatpush1.bf16.msra.mxu0 %v331
        %357 = vmatprep.subr.bf16.mxu0 0
        %358 = vmatpush1.bf16.msra.mxu0 %v330
        %359 = vmatprep.subr.bf16.mxu0 0
        %360 = vmatpush1.bf16.msra.mxu0 %v329
        %361 = vmatprep.subr.bf16.mxu0 0
        %362 = vmatpush2.bf16.msra.mxu0 0
        %363 = vmatprep.subr.bf16.mxu0 0
        %364 = vmatpush2.bf16.msra.mxu0 0
        %365 = vmatprep.subr.bf16.mxu0 0
        %366 = vmatpush2.bf16.msra.mxu0 0
        %367 = vmatprep.subr.bf16.mxu0 0
        %368 = vmatpush2.bf16.msra.mxu0 0
        %369 = vmatprep.subr.bf16.mxu0 0
        %370 = vmatpush2.bf16.msra.mxu0 0
        %371 = vmatprep.subr.bf16.mxu0 0
        %372 = vmatpush2.bf16.msra.mxu0 0
        %373 = vmatprep.subr.bf16.mxu0 0
        %374 = vmatpush2.bf16.msra.mxu0 0
        %375 = vmatprep.subr.bf16.mxu0 0
        %376 = vmatpush2.bf16.msra.mxu0 0
        %377 = vmatprep.mubr.bf16.mxu0 0
        %378 = vmatmul.mubr.bf16.gmra.mxu0 %v289
        %v379 = vpop.f32.mrf.mxu0
        %v380 = vadd.f32 %v271, %v379
        %v381 = vpop.f32.mrf.mxu0
        %v382 = vpop.f32.mrf.mxu0
        %v383 = vadd.f32 %v271, %v382
        %v384 = vpop.f32.mrf.mxu0
        %385 = vmatprep.mubr.bf16.mxu0 0
        %386 = vmatmul.mubr.bf16.gmra.mxu0 %v290
        %v387 = vpop.f32.mrf.mxu0
        %v388 = vadd.f32 %v271, %v387
        %v389 = vpop.f32.mrf.mxu0
        %v390 = vpop.f32.mrf.mxu0
        %v391 = vadd.f32 %v271, %v390
        %v392 = vpop.f32.mrf.mxu0
        %393 = vmatprep.mubr.bf16.mxu0 0
        %394 = vmatmul.mubr.bf16.gmra.mxu0 %v291
        %v395 = vpop.f32.mrf.mxu0
        %v396 = vadd.f32 %v271, %v395
        %v397 = vpop.f32.mrf.mxu0
        %v398 = vpop.f32.mrf.mxu0
        %v399 = vadd.f32 %v271, %v398
        %v400 = vpop.f32.mrf.mxu0
        %401 = vmatprep.mubr.bf16.mxu0 0
        %402 = vmatmul.mubr.bf16.gmra.mxu0 %v292
        %v403 = vpop.f32.mrf.mxu0
        %v404 = vadd.f32 %v271, %v403
        %v405 = vpop.f32.mrf.mxu0
        %v406 = vpop.f32.mrf.mxu0
        %v407 = vadd.f32 %v271, %v406
        %v408 = vpop.f32.mrf.mxu0
        %409 = vdwg.mxu0
        %410 = vst [vmem:[%s235] sm:$0xff] %v380
        %411 = vst [vmem:[%s235 + $0x8] sm:$0xff] %v383
        %412 = vst [vmem:[%s235 + $0x10] sm:$0xff] %v388
        %413 = vst [vmem:[%s235 + $0x18] sm:$0xff] %v391
        %414 = vst [vmem:[%s235 + $0x20] sm:$0xff] %v396
        %415 = vst [vmem:[%s235 + $0x28] sm:$0xff] %v399
        %416 = vst [vmem:[%s235 + $0x30] sm:$0xff] %v404
        %417 = vst [vmem:[%s235 + $0x38] sm:$0xff] %v407
        %s418 = sand.u32 %s121, 1
        %s419 = scalar_lea.sflag [#allocation4], %s418
        %s420 = sand.u32 %s121, 1
        %s421 = smul.addr %s420, 64
        %s422 = scalar_lea.vmem [#allocation7], %s421
        // Predicated region
        $region41: #{tpu_custom_call.1} parent=31 // pred_check
          %p423 = pneg %p131
        $region42: #{tpu_custom_call.1} parent=31 // pred_check_branch
          %425 = sbr.rel (%p423) target = $region44
        $region43: #{tpu_custom_call.1} parent=31 // pred_region
          %s426 = smul.u32 8, %s25
          %s428 = ssub.s32 1024, 1024
          %429 = vsyncadd %s419, %s428
          %s430 = sadd.s32 %s26, %s426
          %s431 = smul.addr %s430, 128
          %s432 = scalar_lea.hbm %s3, %s431
          %s433 = sshll.u32 %s422, 4
          %s434 = int_to_ptr.vmem [resolvable:$true] %s433
          %439 = dma.vmem_to_hbm [thread:$0]  %s434, 1024, %s432, %s419, 128, 128, 8
        $region44: #{tpu_custom_call.1} parent=31 // pred_fallthru
          _
      $region32: #{tpu_custom_call.1} parent=5 // pred_fallthru
        _
      %p440 = scmp.le.s32.totalorder 2, %s16
      // Predicated region
      $region45: #{tpu_custom_call.1} parent=5 // pred_check
        %p441 = pneg %p440
      $region46: #{tpu_custom_call.1} parent=5 // pred_check_branch
        %443 = sbr.rel (%p441) target = $region48
      $region47: #{tpu_custom_call.1} parent=5 // pred_region
        %s444 = ssub.s32 %s16, 2
        // Predicated region
        $region49: #{tpu_custom_call.1} parent=47 // pred_check
          %p445 = pneg %p137
        $region50: #{tpu_custom_call.1} parent=47 // pred_check_branch
          %447 = sbr.rel (%p445) target = $region52
        $region51: #{tpu_custom_call.1} parent=47 // pred_region
          %s448 = sand.u32 %s122, 1
          %s449 = scalar_lea.sflag [#allocation4], %s448
          %s450 = sand.u32 %s122, 1
          %s451 = smul.addr %s450, 64
          %s452 = scalar_lea.vmem [#allocation7], %s451
          %453 = dma.done %s449, 1024
        $region52: #{tpu_custom_call.1} parent=47 // pred_fallthru
          _
      $region48: #{tpu_custom_call.1} parent=5 // pred_fallthru
        _
    $region6: #{tpu_custom_call.1} parent=1 // loop_footer
      %s20 = sadd.s32 1, %s16
    $region7: #{tpu_custom_call.1} parent=1 // loop_footer_branch
      %15 = sbr.rel target = $region3
    $region8: #{tpu_custom_call.1} parent=1 // loop_exit
      _
    %454 = vsyncpa [#allocation3], 1
    %s455 = scalar_lea.sflag [#allocation3], 1
    %456 = vsyncpa %s455, 1
    %457 = vsyncpa [#allocation6], 1
    %458 = vsyncpa [#allocation4], 1
    %s459 = scalar_lea.sflag [#allocation4], 1
    %460 = vsyncpa %s459, 1

</llo_original>
